<compile_context>
chip_gen: v7x
topology: tpu7x:2x2x1
jax: 0.10.0
libtpu: 0.0.40
codegen_flags: <defaults>
</compile_context>

<pallas_src>
import functools

import jax
import jax.numpy as jnp
from jax import lax
from jax.experimental import pallas as pl
from jax.experimental.pallas import tpu as pltpu

EPS = 1e-4


def _sop_trans_loss_kernel(idx_ref,      # (block_b, 1) int32 index tile
                           trans_ref,    # (C, C) resident
                           u_ref,        # (E, 1) resident
                           v_ref,        # (E, C) resident
                           logits_ref,   # (block_b, C) output tile
                           label_ref,    # (block_b, C) label tile
                           loss_ref,     # (1, 1) output (resident block)
                           t_scr,        # (C, C) f32 scratch: normalized T
                           ce_scr,       # (1, 1) f32 scratch: CE sum
                           mse_scr,      # (1, 1) f32 scratch: squared-error sum
                           psum_scr,     # (1, C) f32 scratch: prediction sum
                           *, batch, block_b):
    i = pl.program_id(0)
    num_steps = pl.num_programs(0)

    C = trans_ref.shape[0]
    E = u_ref.shape[0]

    # ---- one-time init: normalized transition matrix + zeroed accumulators --
    @pl.when(i == 0)
    def _init():
        tr = trans_ref[...].astype(jnp.float32)
        t_min = jnp.min(tr)
        t_max = jnp.max(tr)
        # NOTE: like the PyTorch original, this divides by zero if trans is
        # constant (t_max == t_min); degenerate-case semantics preserved.
        t = (tr - t_min) / (t_max - t_min)
        t_scr[...] = jnp.clip(t, 0.0, 1.0)
        ce_scr[...] = jnp.zeros_like(ce_scr)
        mse_scr[...] = jnp.zeros_like(mse_scr)
        psum_scr[...] = jnp.zeros_like(psum_scr)

    T = t_scr[...]                                              # (C, C)
    logits = logits_ref[...].astype(jnp.float32)                # (b, C)
    label = label_ref[...].astype(jnp.float32)                  # (b, C)
    idx = idx_ref[...]                                          # (b, 1) int32

    # ---- fused row gather of u[index], v[index] via one-hot selection matmul
    sel = (idx == lax.broadcasted_iota(jnp.int32, (block_b, E), 1)
           ).astype(jnp.float32)                                # (b, E)
    u_g = jnp.dot(sel, u_ref[...].astype(jnp.float32),
                  preferred_element_type=jnp.float32)           # (b, 1)
    v_g = jnp.dot(sel, v_ref[...].astype(jnp.float32),
                  preferred_element_type=jnp.float32)           # (b, C)

    u_sq = jnp.clip(u_g * u_g * label, 0.0, 1.0)
    v_sq = jnp.clip(v_g * v_g * (1.0 - label), 0.0, 1.0)
    uv = u_sq - v_sq

    # ---- softmax(output) -- reciprocal on the EUP ---------------------------
    row_max = jnp.max(logits, axis=1, keepdims=True)
    ex = jnp.exp(logits - row_max)
    soft = ex * pl.reciprocal(jnp.sum(ex, axis=1, keepdims=True), approx=True)

    # prediction = clamp(softmax @ T + U^2 - V^2, min=eps); L1-normalize; clamp
    pred = jnp.dot(soft, T, preferred_element_type=jnp.float32) + uv
    pred = jnp.maximum(pred, EPS)
    inv_l1 = pl.reciprocal(jnp.maximum(jnp.sum(pred, axis=1, keepdims=True), EPS),
                           approx=True)
    pred = jnp.clip(pred * inv_l1, EPS, 1.0)

    # ---- hard-label path: one_hot(argmax(output)) @ T (batched MXU matmul) --
    col = lax.broadcasted_iota(jnp.int32, (block_b, C), 1)
    first_idx = jnp.min(jnp.where(logits == row_max, col, C),
                        axis=1, keepdims=True)                  # (b, 1) int32
    one_hot = (col == first_idx).astype(jnp.float32)            # (b, C)
    hard_t = jnp.dot(one_hot, T, preferred_element_type=jnp.float32)

    mse_vec = hard_t + uv - label

    # ---- per-tile partial sums (mask padded rows of the last tile) ----------
    row_id = i * block_b + lax.broadcasted_iota(jnp.int32, (block_b, 1), 0)
    valid = row_id < batch                                      # (b, 1) bool

    ce_rows = -jnp.sum(label * jnp.log(pred), axis=1, keepdims=True)   # (b, 1)
    mse_rows = jnp.sum(mse_vec * mse_vec, axis=1, keepdims=True)       # (b, 1)

    ce_scr[...] += jnp.sum(jnp.where(valid, ce_rows, 0.0), axis=0, keepdims=True)
    mse_scr[...] += jnp.sum(jnp.where(valid, mse_rows, 0.0), axis=0, keepdims=True)
    psum_scr[...] += jnp.sum(jnp.where(valid, pred, 0.0), axis=0, keepdims=True)

    # ---- finalize on the last grid step -------------------------------------
    @pl.when(i == num_steps - 1)
    def _finalize():
        inv_b = jnp.float32(1.0 / batch)
        avg_pred = jnp.clip(psum_scr[...] * inv_b, EPS, 1.0)            # (1, C)
        balance_kl = -jnp.sum(jnp.log(avg_pred)) * jnp.float32(1.0 / C)
        loss_ref[...] = (ce_scr[...] + mse_scr[...]) * inv_b + 0.1 * balance_kl


@jax.jit
def sop_trans_loss_forward(trans, u, v, index, output, label):
    """Scalar loss of sop_trans_loss.forward(index, output, label)."""
    B, C = output.shape
    E = u.shape[0]

    # Whole batch in one step when small; otherwise 256-row tiles (multiple of
    # 8 sublanes), with padded rows masked inside the kernel.
    block_b = B if B <= 256 else 256
    num_steps = pl.cdiv(B, block_b)

    kernel = functools.partial(_sop_trans_loss_kernel, batch=B, block_b=block_b)
    idx2d = index.astype(jnp.int32).reshape(B, 1)

    loss = pl.pallas_call(
        kernel,
        out_shape=jax.ShapeDtypeStruct((1, 1), jnp.float32),
        grid_spec=pltpu.PrefetchScalarGridSpec(
            num_scalar_prefetch=0,
            grid=(num_steps,),
            in_specs=[
                pl.BlockSpec((block_b, 1), lambda i: (i, 0)),   # index tile
                pl.BlockSpec((C, C), lambda i: (0, 0)),         # trans (resident)
                pl.BlockSpec((E, 1), lambda i: (0, 0)),         # u (resident)
                pl.BlockSpec((E, C), lambda i: (0, 0)),         # v (resident)
                pl.BlockSpec((block_b, C), lambda i: (i, 0)),   # output tile
                pl.BlockSpec((block_b, C), lambda i: (i, 0)),   # label tile
            ],
            out_specs=pl.BlockSpec((1, 1), lambda i: (0, 0)),
            scratch_shapes=[
                pltpu.VMEM((C, C), jnp.float32),   # normalized T
                pltpu.VMEM((1, 1), jnp.float32),   # CE accumulator
                pltpu.VMEM((1, 1), jnp.float32),   # MSE accumulator
                pltpu.VMEM((1, C), jnp.float32),   # prediction-sum accumulator
            ],
        ),
        compiler_params=pltpu.CompilerParams(
            # accumulators are carried across the batch-tile axis -> sequential
            dimension_semantics=("arbitrary",)),
    )(idx2d, trans, u, v, output, label)
    return loss[0, 0]


def _reference(trans, u, v, index, output, label):
    """Pure-JAX mirror of sop_trans_loss.forward for a sanity check."""
    eps = 1e-4
    T = (trans - trans.min()) / (trans.max() - trans.min())
    T = jnp.clip(T, 0.0, 1.0)
    U_sq = jnp.clip(u[index] ** 2 * label, 0.0, 1.0)
    V_sq = jnp.clip(v[index] ** 2 * (1.0 - label), 0.0, 1.0)
    orig = jax.nn.softmax(output, axis=1)
    pred = jnp.maximum(orig @ T + U_sq - V_sq, eps)
    pred = pred / jnp.maximum(jnp.sum(jnp.abs(pred), axis=1, keepdims=True), eps)
    pred = jnp.clip(pred, eps, 1.0)
    one_hot = jax.nn.one_hot(jnp.argmax(output, axis=1), output.shape[1],
                             dtype=jnp.float32)
    mse = jnp.sum((one_hot @ T + U_sq - V_sq - label) ** 2) / output.shape[0]
    ce = jnp.mean(-jnp.sum(label * jnp.log(pred), axis=-1))
    avg = jnp.clip(jnp.mean(pred, axis=0), eps, 1.0)
    balance_kl = -jnp.sum((1.0 / output.shape[1]) * jnp.log(avg))
    return ce + mse + 0.1 * balance_kl


if __name__ == "__main__":
    num_examp = 32
    num_classes = 10
    batch = 8

    key = jax.random.PRNGKey(0)
    k_u, k_v, k_out, k_lab, k_idx = jax.random.split(key, 5)

    # Deterministic parameter init mirroring the module's __init__:
    trans = jnp.eye(num_classes, dtype=jnp.float32)                       # eye parameter
    u = 1e-8 * jax.random.normal(k_u, (num_examp, 1), dtype=jnp.float32)  # normal(0, 1e-8)
    v = 1e-8 * jax.random.normal(k_v, (num_examp, num_classes), dtype=jnp.float32)

    # Example forward inputs
    index = jax.random.randint(k_idx, (batch,), 0, num_examp)
    output = jax.random.normal(k_out, (batch, num_classes), dtype=jnp.float32)
    labels_int = jax.random.randint(k_lab, (batch,), 0, num_classes)
    label = jax.nn.one_hot(labels_int, num_classes, dtype=jnp.float32)

    loss = sop_trans_loss_forward(trans, u, v, index, output, label)
    jax.block_until_ready(loss)

    ref = _reference(trans, u, v, index, output, label)
    # tolerance loosened to cover the approximate EUP reciprocals
    assert jnp.allclose(loss, ref, rtol=2e-3, atol=2e-3), (loss, ref)

    print("KERNEL_OK")
</pallas_src>

<mosaic_0001>
module attributes {stable_mosaic.version = 11 : i64} {
  func.func @_sop_trans_loss_kernel(%arg0: i32, %arg1: memref<8x1xi32, #tpu.memory_space<vmem>>, %arg2: memref<10x10xf32, #tpu.memory_space<vmem>>, %arg3: memref<32x1xf32, #tpu.memory_space<vmem>>, %arg4: memref<32x10xf32, #tpu.memory_space<vmem>>, %arg5: memref<8x10xf32, #tpu.memory_space<vmem>>, %arg6: memref<8x10xf32, #tpu.memory_space<vmem>>, %arg7: memref<1x1xf32, #tpu.memory_space<vmem>>, %arg8: memref<10x10xf32, #tpu.memory_space<vmem>>, %arg9: memref<1x1xf32, #tpu.memory_space<vmem>>, %arg10: memref<1x1xf32, #tpu.memory_space<vmem>>, %arg11: memref<1x10xf32, #tpu.memory_space<vmem>>) attributes {dimension_semantics = [#tpu.dimension_semantics<arbitrary>], iteration_bounds = array<i64: 1>, scalar_prefetch = 0 : i64, scratch_operands = 4 : i64, tpu.core_type = #tpu.core_type<tc>, window_params = [{transform_indices = @transform_0, window_bounds = array<i64: 8, 1>}, {pipeline_mode = #tpu.pipeline_mode<synchronous>, transform_indices = @transform_1, window_bounds = array<i64: 10, 10>}, {pipeline_mode = #tpu.pipeline_mode<synchronous>, transform_indices = @transform_2, window_bounds = array<i64: 32, 1>}, {pipeline_mode = #tpu.pipeline_mode<synchronous>, transform_indices = @transform_3, window_bounds = array<i64: 32, 10>}, {transform_indices = @transform_4, window_bounds = array<i64: 8, 10>}, {transform_indices = @transform_5, window_bounds = array<i64: 8, 10>}, {pipeline_mode = #tpu.pipeline_mode<synchronous>, transform_indices = @transform_6, window_bounds = array<i64: 1, 1>}]} {
    %c0_i32 = arith.constant 0 : i32
    %0 = arith.cmpi eq, %arg0, %c0_i32 : i32
    %1 = arith.extui %0 : i1 to i32
    %c0_i32_0 = arith.constant 0 : i32
    %2 = arith.cmpi ne, %1, %c0_i32_0 : i32
    scf.if %2 {
      %c0_52 = arith.constant 0 : index
      %c0_53 = arith.constant 0 : index
      %112 = vector.load %arg2[%c0_52, %c0_53] : memref<10x10xf32, #tpu.memory_space<vmem>>, vector<10x10xf32>
      %113 = vector.shape_cast %112 : vector<10x10xf32> to vector<1x10x10xf32>
      %cst_54 = arith.constant dense<0x7F800000> : vector<1xf32>
      %114 = vector.multi_reduction <minimumf>, %113, %cst_54 [1, 2] : vector<1x10x10xf32> to vector<1xf32>
      %115 = vector.shape_cast %114 : vector<1xf32> to vector<1x1x1xf32>
      %116 = vector.extract %115[0, 0, 0] : f32 from vector<1x1x1xf32>
      %117 = vector.shape_cast %112 : vector<10x10xf32> to vector<1x10x10xf32>
      %cst_55 = arith.constant dense<0xFF800000> : vector<1xf32>
      %118 = vector.multi_reduction <maximumf>, %117, %cst_55 [1, 2] : vector<1x10x10xf32> to vector<1xf32>
      %119 = vector.shape_cast %118 : vector<1xf32> to vector<1x1x1xf32>
      %120 = vector.extract %119[0, 0, 0] : f32 from vector<1x1x1xf32>
      %121 = vector.broadcast %116 : f32 to vector<10x10xf32>
      %122 = arith.subf %112, %121 : vector<10x10xf32>
      %123 = arith.subf %120, %116 : f32
      %124 = vector.broadcast %123 : f32 to vector<10x10xf32>
      %125 = arith.divf %122, %124 : vector<10x10xf32>
      %cst_56 = arith.constant 0.000000e+00 : f32
      %cst_57 = arith.constant 1.000000e+00 : f32
      %126 = vector.broadcast %cst_56 : f32 to vector<10x10xf32>
      %127 = arith.maximumf %126, %125 : vector<10x10xf32>
      %128 = vector.broadcast %cst_57 : f32 to vector<10x10xf32>
      %129 = arith.minimumf %128, %127 : vector<10x10xf32>
      %c0_58 = arith.constant 0 : index
      %c0_59 = arith.constant 0 : index
      %130 = vector.load %arg8[%c0_58, %c0_59] : memref<10x10xf32, #tpu.memory_space<vmem>>, vector<10x10xf32>
      tpu.vector_store %arg8[%c0_58, %c0_59], %129 {strides = array<i32>} : memref<10x10xf32, #tpu.memory_space<vmem>>, vector<10x10xf32>,
      %cst_60 = arith.constant 0.000000e+00 : f32
      %131 = vector.broadcast %cst_60 : f32 to vector<1x1xf32>
      %c0_61 = arith.constant 0 : index
      %c0_62 = arith.constant 0 : index
      %132 = vector.load %arg9[%c0_61, %c0_62] : memref<1x1xf32, #tpu.memory_space<vmem>>, vector<1x1xf32>
      tpu.vector_store %arg9[%c0_61, %c0_62], %131 {strides = array<i32>} : memref<1x1xf32, #tpu.memory_space<vmem>>, vector<1x1xf32>,
      %cst_63 = arith.constant 0.000000e+00 : f32
      %133 = vector.broadcast %cst_63 : f32 to vector<1x1xf32>
      %c0_64 = arith.constant 0 : index
      %c0_65 = arith.constant 0 : index
      %134 = vector.load %arg10[%c0_64, %c0_65] : memref<1x1xf32, #tpu.memory_space<vmem>>, vector<1x1xf32>
      tpu.vector_store %arg10[%c0_64, %c0_65], %133 {strides = array<i32>} : memref<1x1xf32, #tpu.memory_space<vmem>>, vector<1x1xf32>,
      %cst_66 = arith.constant 0.000000e+00 : f32
      %135 = vector.broadcast %cst_66 : f32 to vector<1x10xf32>
      %c0_67 = arith.constant 0 : index
      %c0_68 = arith.constant 0 : index
      %136 = vector.load %arg11[%c0_67, %c0_68] : memref<1x10xf32, #tpu.memory_space<vmem>>, vector<1x10xf32>
      tpu.vector_store %arg11[%c0_67, %c0_68], %135 {strides = array<i32>} : memref<1x10xf32, #tpu.memory_space<vmem>>, vector<1x10xf32>,
    } else {
    }
    %c0 = arith.constant 0 : index
    %c0_1 = arith.constant 0 : index
    %3 = vector.load %arg8[%c0, %c0_1] : memref<10x10xf32, #tpu.memory_space<vmem>>, vector<10x10xf32>
    %c0_2 = arith.constant 0 : index
    %c0_3 = arith.constant 0 : index
    %4 = vector.load %arg5[%c0_2, %c0_3] : memref<8x10xf32, #tpu.memory_space<vmem>>, vector<8x10xf32>
    %c0_4 = arith.constant 0 : index
    %c0_5 = arith.constant 0 : index
    %5 = vector.load %arg6[%c0_4, %c0_5] : memref<8x10xf32, #tpu.memory_space<vmem>>, vector<8x10xf32>
    %c0_6 = arith.constant 0 : index
    %c0_7 = arith.constant 0 : index
    %6 = vector.load %arg1[%c0_6, %c0_7] : memref<8x1xi32, #tpu.memory_space<vmem>>, vector<8x1xi32>
    %7 = tpu.iota {dimensions = array<i32: 1>} : vector<8x32xi32>
    %8 = vector.broadcast %6 : vector<8x1xi32> to vector<8x32xi32>
    %9 = arith.cmpi eq, %8, %7 : vector<8x32xi32>
    %10 = arith.extui %9 : vector<8x32xi1> to vector<8x32xi32>
    %11 = arith.sitofp %10 : vector<8x32xi32> to vector<8x32xf32>
    %c0_8 = arith.constant 0 : index
    %c0_9 = arith.constant 0 : index
    %12 = vector.load %arg3[%c0_8, %c0_9] : memref<32x1xf32, #tpu.memory_space<vmem>>, vector<32x1xf32>
    %cst = arith.constant dense<0.000000e+00> : vector<8x1xf32>
    %13 = tpu.matmul %11, %12, %cst {dimension_numbers = #tpu.dot_dimension_numbers<[1], [0], [0], [1], [0, 0, 1, 1], [], []>} : vector<8x32xf32>, vector<32x1xf32>, vector<8x1xf32> -> vector<8x1xf32>
    %c0_10 = arith.constant 0 : index
    %c0_11 = arith.constant 0 : index
    %14 = vector.load %arg4[%c0_10, %c0_11] : memref<32x10xf32, #tpu.memory_space<vmem>>, vector<32x10xf32>
    %cst_12 = arith.constant dense<0.000000e+00> : vector<8x10xf32>
    %15 = tpu.matmul %11, %14, %cst_12 {dimension_numbers = #tpu.dot_dimension_numbers<[1], [0], [0], [1], [0, 0, 1, 1], [], []>} : vector<8x32xf32>, vector<32x10xf32>, vector<8x10xf32> -> vector<8x10xf32>
    %16 = arith.mulf %13, %13 : vector<8x1xf32>
    %17 = vector.broadcast %16 : vector<8x1xf32> to vector<8x10xf32>
    %18 = arith.mulf %17, %5 : vector<8x10xf32>
    %cst_13 = arith.constant 0.000000e+00 : f32
    %cst_14 = arith.constant 1.000000e+00 : f32
    %19 = vector.broadcast %cst_13 : f32 to vector<8x10xf32>
    %20 = arith.maximumf %19, %18 : vector<8x10xf32>
    %21 = vector.broadcast %cst_14 : f32 to vector<8x10xf32>
    %22 = arith.minimumf %21, %20 : vector<8x10xf32>
    %23 = arith.mulf %15, %15 : vector<8x10xf32>
    %cst_15 = arith.constant 1.000000e+00 : f32
    %24 = vector.broadcast %cst_15 : f32 to vector<8x10xf32>
    %25 = arith.subf %24, %5 : vector<8x10xf32>
    %26 = arith.mulf %23, %25 : vector<8x10xf32>
    %cst_16 = arith.constant 0.000000e+00 : f32
    %cst_17 = arith.constant 1.000000e+00 : f32
    %27 = vector.broadcast %cst_16 : f32 to vector<8x10xf32>
    %28 = arith.maximumf %27, %26 : vector<8x10xf32>
    %29 = vector.broadcast %cst_17 : f32 to vector<8x10xf32>
    %30 = arith.minimumf %29, %28 : vector<8x10xf32>
    %31 = arith.subf %22, %30 : vector<8x10xf32>
    %cst_18 = arith.constant dense<0xFF800000> : vector<8xf32>
    %32 = vector.multi_reduction <maximumf>, %4, %cst_18 [1] : vector<8x10xf32> to vector<8xf32>
    %33 = vector.shape_cast %32 : vector<8xf32> to vector<8x1xf32>
    %34 = vector.broadcast %33 : vector<8x1xf32> to vector<8x10xf32>
    %35 = arith.subf %4, %34 : vector<8x10xf32>
    %36 = math.exp %35 : vector<8x10xf32>
    %cst_19 = arith.constant dense<0.000000e+00> : vector<8xf32>
    %37 = vector.multi_reduction <add>, %36, %cst_19 [1] : vector<8x10xf32> to vector<8xf32>
    %38 = vector.shape_cast %37 : vector<8xf32> to vector<8x1xf32>
    %39 = tpu.reciprocal %38 {approx = true} : vector<8x1xf32> -> vector<8x1xf32>
    %40 = vector.broadcast %39 : vector<8x1xf32> to vector<8x10xf32>
    %41 = arith.mulf %36, %40 : vector<8x10xf32>
    %cst_20 = arith.constant dense<0.000000e+00> : vector<8x10xf32>
    %42 = tpu.matmul %41, %3, %cst_20 {dimension_numbers = #tpu.dot_dimension_numbers<[1], [0], [0], [1], [0, 0, 1, 1], [], []>} : vector<8x10xf32>, vector<10x10xf32>, vector<8x10xf32> -> vector<8x10xf32>
    %43 = arith.addf %42, %31 : vector<8x10xf32>
    %cst_21 = arith.constant 9.99999974E-5 : f32
    %44 = vector.broadcast %cst_21 : f32 to vector<8x10xf32>
    %45 = arith.maximumf %43, %44 : vector<8x10xf32>
    %cst_22 = arith.constant dense<0.000000e+00> : vector<8xf32>
    %46 = vector.multi_reduction <add>, %45, %cst_22 [1] : vector<8x10xf32> to vector<8xf32>
    %47 = vector.shape_cast %46 : vector<8xf32> to vector<8x1xf32>
    %cst_23 = arith.constant 9.99999974E-5 : f32
    %48 = vector.broadcast %cst_23 : f32 to vector<8x1xf32>
    %49 = arith.maximumf %47, %48 : vector<8x1xf32>
    %50 = tpu.reciprocal %49 {approx = true} : vector<8x1xf32> -> vector<8x1xf32>
    %51 = vector.broadcast %50 : vector<8x1xf32> to vector<8x10xf32>
    %52 = arith.mulf %45, %51 : vector<8x10xf32>
    %cst_24 = arith.constant 9.99999974E-5 : f32
    %cst_25 = arith.constant 1.000000e+00 : f32
    %53 = vector.broadcast %cst_24 : f32 to vector<8x10xf32>
    %54 = arith.maximumf %53, %52 : vector<8x10xf32>
    %55 = vector.broadcast %cst_25 : f32 to vector<8x10xf32>
    %56 = arith.minimumf %55, %54 : vector<8x10xf32>
    %57 = tpu.iota {dimensions = array<i32: 1>} : vector<8x10xi32>
    %58 = vector.broadcast %33 : vector<8x1xf32> to vector<8x10xf32>
    %59 = arith.cmpf oeq, %4, %58 : vector<8x10xf32>
    %c10_i32 = arith.constant 10 : i32
    %60 = vector.broadcast %c10_i32 : i32 to vector<8x10xi32>
    %61 = arith.select %59, %57, %60 : vector<8x10xi1>, vector<8x10xi32>
    %cst_26 = arith.constant dense<2147483647> : vector<8xi32>
    %62 = vector.multi_reduction <minsi>, %61, %cst_26 [1] : vector<8x10xi32> to vector<8xi32>
    %63 = vector.shape_cast %62 : vector<8xi32> to vector<8x1xi32>
    %64 = vector.broadcast %63 : vector<8x1xi32> to vector<8x10xi32>
    %65 = arith.cmpi eq, %57, %64 : vector<8x10xi32>
    %66 = arith.extui %65 : vector<8x10xi1> to vector<8x10xi32>
    %67 = arith.sitofp %66 : vector<8x10xi32> to vector<8x10xf32>
    %cst_27 = arith.constant dense<0.000000e+00> : vector<8x10xf32>
    %68 = tpu.matmul %67, %3, %cst_27 {dimension_numbers = #tpu.dot_dimension_numbers<[1], [0], [0], [1], [0, 0, 1, 1], [], []>} : vector<8x10xf32>, vector<10x10xf32>, vector<8x10xf32> -> vector<8x10xf32>
    %69 = arith.addf %68, %31 : vector<8x10xf32>
    %70 = arith.subf %69, %5 : vector<8x10xf32>
    %c8_i32 = arith.constant 8 : i32
    %71 = arith.muli %arg0, %c8_i32 : i32
    %72 = tpu.iota {dimensions = array<i32: 0>} : vector<8x1xi32>
    %73 = vector.broadcast %71 : i32 to vector<8x1xi32>
    %74 = arith.addi %73, %72 : vector<8x1xi32>
    %c8_i32_28 = arith.constant 8 : i32
    %75 = vector.broadcast %c8_i32_28 : i32 to vector<8x1xi32>
    %76 = arith.cmpi slt, %74, %75 : vector<8x1xi32>
    %77 = math.log %56 : vector<8x10xf32>
    %78 = arith.mulf %5, %77 : vector<8x10xf32>
    %cst_29 = arith.constant dense<0.000000e+00> : vector<8xf32>
    %79 = vector.multi_reduction <add>, %78, %cst_29 [1] : vector<8x10xf32> to vector<8xf32>
    %80 = vector.shape_cast %79 : vector<8xf32> to vector<8x1xf32>
    %cst_30 = arith.constant 0.000000e+00 : f32
    %81 = vector.broadcast %cst_30 : f32 to vector<8x1xf32>
    %82 = arith.subf %81, %80 : vector<8x1xf32>
    %83 = arith.mulf %70, %70 : vector<8x10xf32>
    %cst_31 = arith.constant dense<0.000000e+00> : vector<8xf32>
    %84 = vector.multi_reduction <add>, %83, %cst_31 [1] : vector<8x10xf32> to vector<8xf32>
    %85 = vector.shape_cast %84 : vector<8xf32> to vector<8x1xf32>
    %c0_32 = arith.constant 0 : index
    %c0_33 = arith.constant 0 : index
    %86 = vector.load %arg9[%c0_32, %c0_33] : memref<1x1xf32, #tpu.memory_space<vmem>>, vector<1x1xf32>
    %cst_34 = arith.constant 0.000000e+00 : f32
    %87 = vector.broadcast %cst_34 : f32 to vector<8x1xf32>
    %88 = arith.select %76, %82, %87 : vector<8x1xi1>, vector<8x1xf32>
    %cst_35 = arith.constant dense<0.000000e+00> : vector<1xf32>
    %89 = vector.multi_reduction <add>, %88, %cst_35 [0] : vector<8x1xf32> to vector<1xf32>
    %90 = vector.shape_cast %89 : vector<1xf32> to vector<1x1xf32>
    %91 = arith.addf %86, %90 : vector<1x1xf32>
    %c0_36 = arith.constant 0 : index
    %c0_37 = arith.constant 0 : index
    %92 = vector.load %arg9[%c0_36, %c0_37] : memref<1x1xf32, #tpu.memory_space<vmem>>, vector<1x1xf32>
    tpu.vector_store %arg9[%c0_36, %c0_37], %91 {strides = array<i32>} : memref<1x1xf32, #tpu.memory_space<vmem>>, vector<1x1xf32>,
    %c0_38 = arith.constant 0 : index
    %c0_39 = arith.constant 0 : index
    %93 = vector.load %arg10[%c0_38, %c0_39] : memref<1x1xf32, #tpu.memory_space<vmem>>, vector<1x1xf32>
    %cst_40 = arith.constant 0.000000e+00 : f32
    %94 = vector.broadcast %cst_40 : f32 to vector<8x1xf32>
    %95 = arith.select %76, %85, %94 : vector<8x1xi1>, vector<8x1xf32>
    %cst_41 = arith.constant dense<0.000000e+00> : vector<1xf32>
    %96 = vector.multi_reduction <add>, %95, %cst_41 [0] : vector<8x1xf32> to vector<1xf32>
    %97 = vector.shape_cast %96 : vector<1xf32> to vector<1x1xf32>
    %98 = arith.addf %93, %97 : vector<1x1xf32>
    %c0_42 = arith.constant 0 : index
    %c0_43 = arith.constant 0 : index
    %99 = vector.load %arg10[%c0_42, %c0_43] : memref<1x1xf32, #tpu.memory_space<vmem>>, vector<1x1xf32>
    tpu.vector_store %arg10[%c0_42, %c0_43], %98 {strides = array<i32>} : memref<1x1xf32, #tpu.memory_space<vmem>>, vector<1x1xf32>,
    %c0_44 = arith.constant 0 : index
    %c0_45 = arith.constant 0 : index
    %100 = vector.load %arg11[%c0_44, %c0_45] : memref<1x10xf32, #tpu.memory_space<vmem>>, vector<1x10xf32>
    %cst_46 = arith.constant 0.000000e+00 : f32
    %101 = vector.shape_cast %76 : vector<8x1xi1> to vector<8x1xi1>
    %102 = vector.broadcast %101 : vector<8x1xi1> to vector<8x10xi1>
    %103 = vector.broadcast %cst_46 : f32 to vector<8x10xf32>
    %104 = arith.select %102, %56, %103 : vector<8x10xi1>, vector<8x10xf32>
    %cst_47 = arith.constant dense<0.000000e+00> : vector<10xf32>
    %105 = vector.multi_reduction <add>, %104, %cst_47 [0] : vector<8x10xf32> to vector<10xf32>
    %106 = vector.shape_cast %105 : vector<10xf32> to vector<1x10xf32>
    %107 = arith.addf %100, %106 : vector<1x10xf32>
    %c0_48 = arith.constant 0 : index
    %c0_49 = arith.constant 0 : index
    %108 = vector.load %arg11[%c0_48, %c0_49] : memref<1x10xf32, #tpu.memory_space<vmem>>, vector<1x10xf32>
    tpu.vector_store %arg11[%c0_48, %c0_49], %107 {strides = array<i32>} : memref<1x10xf32, #tpu.memory_space<vmem>>, vector<1x10xf32>,
    %c0_i32_50 = arith.constant 0 : i32
    %109 = arith.cmpi eq, %arg0, %c0_i32_50 : i32
    %110 = arith.extui %109 : i1 to i32
    %c0_i32_51 = arith.constant 0 : i32
    %111 = arith.cmpi ne, %110, %c0_i32_51 : i32
    scf.if %111 {
      %c0_52 = arith.constant 0 : index
      %c0_53 = arith.constant 0 : index
      %112 = vector.load %arg11[%c0_52, %c0_53] : memref<1x10xf32, #tpu.memory_space<vmem>>, vector<1x10xf32>
      %cst_54 = arith.constant 1.250000e-01 : f32
      %113 = vector.broadcast %cst_54 : f32 to vector<1x10xf32>
      %114 = arith.mulf %112, %113 : vector<1x10xf32>
      %cst_55 = arith.constant 9.99999974E-5 : f32
      %cst_56 = arith.constant 1.000000e+00 : f32
      %115 = vector.broadcast %cst_55 : f32 to vector<1x10xf32>
      %116 = arith.maximumf %115, %114 : vector<1x10xf32>
      %117 = vector.broadcast %cst_56 : f32 to vector<1x10xf32>
      %118 = arith.minimumf %117, %116 : vector<1x10xf32>
      %119 = math.log %118 : vector<1x10xf32>
      %120 = vector.shape_cast %119 : vector<1x10xf32> to vector<1x1x10xf32>
      %cst_57 = arith.constant dense<0.000000e+00> : vector<1xf32>
      %121 = vector.multi_reduction <add>, %120, %cst_57 [1, 2] : vector<1x1x10xf32> to vector<1xf32>
      %122 = vector.shape_cast %121 : vector<1xf32> to vector<1x1x1xf32>
      %123 = vector.extract %122[0, 0, 0] : f32 from vector<1x1x1xf32>
      %cst_58 = arith.constant 0.000000e+00 : f32
      %124 = arith.subf %cst_58, %123 : f32
      %cst_59 = arith.constant 1.000000e-01 : f32
      %125 = arith.mulf %124, %cst_59 : f32
      %c0_60 = arith.constant 0 : index
      %c0_61 = arith.constant 0 : index
      %126 = vector.load %arg9[%c0_60, %c0_61] : memref<1x1xf32, #tpu.memory_space<vmem>>, vector<1x1xf32>
      %c0_62 = arith.constant 0 : index
      %c0_63 = arith.constant 0 : index
      %127 = vector.load %arg10[%c0_62, %c0_63] : memref<1x1xf32, #tpu.memory_space<vmem>>, vector<1x1xf32>
      %128 = arith.addf %126, %127 : vector<1x1xf32>
      %cst_64 = arith.constant 1.250000e-01 : f32
      %129 = vector.broadcast %cst_64 : f32 to vector<1x1xf32>
      %130 = arith.mulf %128, %129 : vector<1x1xf32>
      %cst_65 = arith.constant 1.000000e-01 : f32
      %131 = arith.mulf %cst_65, %125 : f32
      %132 = vector.broadcast %131 : f32 to vector<1x1xf32>
      %133 = arith.addf %130, %132 : vector<1x1xf32>
      %c0_66 = arith.constant 0 : index
      %c0_67 = arith.constant 0 : index
      %134 = vector.load %arg7[%c0_66, %c0_67] : memref<1x1xf32, #tpu.memory_space<vmem>>, vector<1x1xf32>
      tpu.vector_store %arg7[%c0_66, %c0_67], %133 {strides = array<i32>} : memref<1x1xf32, #tpu.memory_space<vmem>>, vector<1x1xf32>,
    } else {
    }
    return
  }
  func.func @transform_0(%arg0: i32) -> (i32, i32) {
    %c0_i32 = arith.constant 0 : i32
    %c0_i32_0 = arith.constant 0 : i32
    return %arg0, %c0_i32 : i32, i32
  }
  func.func @transform_1(%arg0: i32) -> (i32, i32) {
    %c0_i32 = arith.constant 0 : i32
    %c0_i32_0 = arith.constant 0 : i32
    %c0_i32_1 = arith.constant 0 : i32
    return %c0_i32, %c0_i32_0 : i32, i32
  }
  func.func @transform_2(%arg0: i32) -> (i32, i32) {
    %c0_i32 = arith.constant 0 : i32
    %c0_i32_0 = arith.constant 0 : i32
    %c0_i32_1 = arith.constant 0 : i32
    return %c0_i32, %c0_i32_0 : i32, i32
  }
  func.func @transform_3(%arg0: i32) -> (i32, i32) {
    %c0_i32 = arith.constant 0 : i32
    %c0_i32_0 = arith.constant 0 : i32
    %c0_i32_1 = arith.constant 0 : i32
    return %c0_i32, %c0_i32_0 : i32, i32
  }
  func.func @transform_4(%arg0: i32) -> (i32, i32) {
    %c0_i32 = arith.constant 0 : i32
    %c0_i32_0 = arith.constant 0 : i32
    return %arg0, %c0_i32 : i32, i32
  }
  func.func @transform_5(%arg0: i32) -> (i32, i32) {
    %c0_i32 = arith.constant 0 : i32
    %c0_i32_0 = arith.constant 0 : i32
    return %arg0, %c0_i32 : i32, i32
  }
  func.func @transform_6(%arg0: i32) -> (i32, i32) {
    %c0_i32 = arith.constant 0 : i32
    %c0_i32_0 = arith.constant 0 : i32
    %c0_i32_1 = arith.constant 0 : i32
    return %c0_i32, %c0_i32_0 : i32, i32
  }
}

</mosaic_0001>

<llo_original>
// kernel: sop_trans_loss_forward.1
$region0: #{sop_trans_loss_forward.1}
  #allocation0 [shape = 'u32[]', space=smem, size = 0x4, offset = 0x4, fixed_abs, tag = 'smem constant byte address 0x4 - core index']
  #allocation1 [shape = 'u32[144,128]{1,0:T(1,128)}', space=vmem, size = 0x12000, scoped, tag = 'internal scratch']
  #allocation2 [shape = 'f32[10,10]{1,0:T(8,128)}', space=vmem, size = 0x2000, scoped, tag = 'scratch operand']
  #allocation3 [shape = 'f32[1,1]{1,0:T(1,128)}', space=vmem, size = 0x200, scoped, tag = 'scratch operand']
  #allocation4 [shape = 'f32[1,1]{1,0:T(1,128)}', space=vmem, size = 0x200, scoped, tag = 'scratch operand']
  #allocation5 [shape = 'f32[1,10]{1,0:T(1,128)}', space=vmem, size = 0x200, scoped, tag = 'scratch operand']
  %s0 = inlined_call_operand.vmem [shape: s32[8,1], index: 0, kind: input, shape index: {}]
  %s1 = inlined_call_operand.vmem [shape: f32[10,10], index: 1, kind: input, shape index: {}]
  %s2 = inlined_call_operand.vmem [shape: f32[32,1], index: 2, kind: input, shape index: {}]
  %s3 = inlined_call_operand.vmem [shape: f32[32,10], index: 3, kind: input, shape index: {}]
  %s4 = inlined_call_operand.vmem [shape: f32[8,10], index: 4, kind: input, shape index: {}]
  %s5 = inlined_call_operand.vmem [shape: f32[8,10], index: 5, kind: input, shape index: {}]
  %s6 = inlined_call_operand.hbm [shape: f32[1,1], index: 6, kind: output, shape index: {}]
  %s7 = sld [smem:[#allocation0]]
  $region42: #{sop_trans_loss_forward.1} parent=0
    _
  %s9 = ssub.s32 1, %s7
  %s10 = scalar_select 0, %s9, %s7
  $region1: #{sop_trans_loss_forward.1} parent=0
    #allocation6 [shape = 'u8[512]{0}', space=vmem, size = 0x400, scoped, tag = 'output window, operand 0, single buffered']
    #allocation7 [shape = 's32[1]{0}', space=sflag, size = 0x4, scoped, tag = 'scoped memory for sop_trans_loss_forward.1']
    %11 = vsyncpa [#allocation7], 0
    // Predicated region
    $region2: #{sop_trans_loss_forward.1} parent=1 // pred_check
      _
    $region3: #{sop_trans_loss_forward.1} parent=1 // pred_check_branch
      %13 = sbr.rel (0) target = $region5
    $region4: #{sop_trans_loss_forward.1} parent=1 // pred_region
      _
    $region5: #{sop_trans_loss_forward.1} parent=1 // pred_fallthru
      _
    // Predicated region
    $region6: #{sop_trans_loss_forward.1} parent=1 // pred_check
      _
    $region7: #{sop_trans_loss_forward.1} parent=1 // pred_check_branch
      %15 = sbr.rel (0) target = $region9
    $region8: #{sop_trans_loss_forward.1} parent=1 // pred_region
      _
    $region9: #{sop_trans_loss_forward.1} parent=1 // pred_fallthru
      _
    // Predicated region
    $region10: #{sop_trans_loss_forward.1} parent=1 // pred_check
      _
    $region11: #{sop_trans_loss_forward.1} parent=1 // pred_check_branch
      %17 = sbr.rel (0) target = $region13
    $region12: #{sop_trans_loss_forward.1} parent=1 // pred_region
      _
    $region13: #{sop_trans_loss_forward.1} parent=1 // pred_fallthru
      _
    // Predicated region
    $region14: #{sop_trans_loss_forward.1} parent=1 // pred_check
      _
    $region15: #{sop_trans_loss_forward.1} parent=1 // pred_check_branch
      %19 = sbr.rel (0) target = $region17
    $region16: #{sop_trans_loss_forward.1} parent=1 // pred_region
      _
    $region17: #{sop_trans_loss_forward.1} parent=1 // pred_fallthru
      _
    // Predicated region
    $region18: #{sop_trans_loss_forward.1} parent=1 // pred_check
      _
    $region19: #{sop_trans_loss_forward.1} parent=1 // pred_check_branch
      %21 = sbr.rel (0) target = $region21
    $region20: #{sop_trans_loss_forward.1} parent=1 // pred_region
      _
    $region21: #{sop_trans_loss_forward.1} parent=1 // pred_fallthru
      _
    // Predicated region
    $region22: #{sop_trans_loss_forward.1} parent=1 // pred_check
      _
    $region23: #{sop_trans_loss_forward.1} parent=1 // pred_check_branch
      %23 = sbr.rel (0) target = $region25
    $region24: #{sop_trans_loss_forward.1} parent=1 // pred_region
      _
    $region25: #{sop_trans_loss_forward.1} parent=1 // pred_fallthru
      _
    %p24 = scmp.eq.s32.totalorder 0, 0
    // Predicated region
    $region26: #{sop_trans_loss_forward.1} parent=1 // pred_check
      %p25 = pneg %p24
    $region27: #{sop_trans_loss_forward.1} parent=1 // pred_check_branch
      %27 = sbr.rel (%p25) target = $region29
    $region28: #{sop_trans_loss_forward.1} parent=1 // pred_region
      %v28 = vld [vmem:[%s1] sm:$0xff]
      %v29 = vld [vmem:[%s1 + $0x8] sm:$0x3]
      %vm30 = vcmask 80896
      %v31 = vsel %vm30, %v28, inf
      %vm32 = vcmask 74752
      %v33 = vsel %vm32, %v29, inf
      %v34 = vmin.f32 %v31, %v33
      %35 = vmin.xlane.f32.xlu0 %v34
      %v36 = vpop.xlane.xlu0 %35
      %v37 = vrot.slane %v36, 4
      %v38 = vmin.f32 %v36, %v37
      %v39 = vrot.slane %v38, 2
      %v40 = vmin.f32 %v38, %v39
      %v41 = vrot.slane %v40, 1
      %v42 = vmin.f32 %v40, %v41
      %s43 = vtos %v42
      %v44 = vsel %vm30, %v28, -inf
      %v45 = vsel %vm32, %v29, -inf
      %v46 = vmax.f32 %v44, %v45
      %47 = vmax.xlane.f32.xlu0 %v46
      %v48 = vpop.xlane.xlu0 %47
      %v49 = vrot.slane %v48, 4
      %v50 = vmax.f32 %v48, %v49
      %v51 = vrot.slane %v50, 2
      %v52 = vmax.f32 %v50, %v51
      %v53 = vrot.slane %v52, 1
      %v54 = vmax.f32 %v52, %v53
      %s55 = vtos %v54
      %v56 = vstv %s43
      %v57 = vsub.f32 %v28, %v56
      %v58 = vsub.f32 %v29, %v56
      %s59 = ssub.f32 %s55, %s43
      %v60 = vstv %s59
      %v61 = vrcp.pop %v60
      %v62 = vmul.f32 %v57, %v61
      %v63 = vmul.f32 %v58, %v61
      %v64 = vmax.f32 %v62, 0.0
      %v65 = vmax.f32 %v63, 0.0
      %v66 = vmin.f32 %v64, 1.0
      %v67 = vmin.f32 %v65, 1.0
      %68 = vst.msk [vmem:[#allocation2] sm:$0xff] %vm30, %v66
      %69 = vst.msk [vmem:[#allocation2 + $0x8] sm:$0x3] %vm32, %v67
      %vm70 = vcmask 0
      %71 = vst.msk [vmem:[#allocation3] sm:$0x1] %vm70, 0.0
      %72 = vst.msk [vmem:[#allocation4] sm:$0x1] %vm70, 0.0
      %vm73 = vcmask 73728
      %74 = vst.msk [vmem:[#allocation5] sm:$0x1] %vm73, 0.0
    $region29: #{sop_trans_loss_forward.1} parent=1 // pred_fallthru
      _
    %v75 = vld [vmem:[#allocation2] sm:$0xff]
    %v76 = vld [vmem:[#allocation2 + $0x8] sm:$0x3]
    %v77 = vld [vmem:[%s4] sm:$0xff]
    %v78 = vld [vmem:[%s5] sm:$0xff]
    %v79 = vld [vmem:[%s0] sm:$0xff]
    %v80 = vlaneseq
    %v81 = vand.u32 %v80, 127
    %82 = vset.pattern.permute.xlu0 0
    %83 = vperm.xlu0 %82, %v79
    %v84 = vpop.permute.xlu0 %83
    %vm85 = vcmp.eq.s32.totalorder %v84, %v81
    %v86 = vsel %vm85, 1, 0
    %v87 = vcvt.s32.f32 %v86
    %v88 = vld [vmem:[%s2] sm:$0xff]
    %v89 = vld [vmem:[%s2 + $0x8] sm:$0xff]
    %v90 = vld [vmem:[%s2 + $0x10] sm:$0xff]
    %v91 = vld [vmem:[%s2 + $0x18] sm:$0xff]
    %vm92 = vcmask 261120
    %v94 = vsel %vm92, %v87, 0
    %96 = vmatprep.subr.mxu0 0.0
    %97 = vmatpush1.msra.mxu0 %v88
    %98 = vmatprep.subr.mxu0 0.0
    %99 = vmatpush1.msra.mxu0 %v89
    %100 = vmatprep.subr.mxu0 0.0
    %101 = vmatpush1.msra.mxu0 %v90
    %102 = vmatprep.subr.mxu0 0.0
    %103 = vmatpush1.msra.mxu0 %v91
    %104 = vmatprep.subr.mxu0 0.0
    %105 = vmatpush1.msra.mxu0 0.0
    %106 = vmatprep.subr.mxu0 0.0
    %107 = vmatpush1.msra.mxu0 0.0
    %108 = vmatprep.subr.mxu0 0.0
    %109 = vmatpush1.msra.mxu0 0.0
    %110 = vmatprep.subr.mxu0 0.0
    %111 = vmatpush1.msra.mxu0 0.0
    %112 = vmatprep.subr.mxu0 0.0
    %113 = vmatpush1.msra.mxu0 0.0
    %114 = vmatprep.subr.mxu0 0.0
    %115 = vmatpush1.msra.mxu0 0.0
    %116 = vmatprep.subr.mxu0 0.0
    %117 = vmatpush1.msra.mxu0 0.0
    %118 = vmatprep.subr.mxu0 0.0
    %119 = vmatpush1.msra.mxu0 0.0
    %120 = vmatprep.subr.mxu0 0.0
    %121 = vmatpush1.msra.mxu0 0.0
    %122 = vmatprep.subr.mxu0 0.0
    %123 = vmatpush1.msra.mxu0 0.0
    %124 = vmatprep.subr.mxu0 0.0
    %125 = vmatpush1.msra.mxu0 0.0
    %126 = vmatprep.subr.mxu0 0.0
    %127 = vmatpush1.msra.mxu0 0.0
    %128 = vmatprep.subr.mxu0 0.0
    %129 = vmatpush1.msra.mxu0 0.0
    %130 = vmatprep.subr.mxu0 0.0
    %131 = vmatpush1.msra.mxu0 0.0
    %132 = vmatprep.subr.mxu0 0.0
    %133 = vmatpush1.msra.mxu0 0.0
    %134 = vmatprep.subr.mxu0 0.0
    %135 = vmatpush1.msra.mxu0 0.0
    %136 = vmatprep.subr.mxu0 0.0
    %137 = vmatpush1.msra.mxu0 0.0
    %138 = vmatprep.subr.mxu0 0.0
    %139 = vmatpush1.msra.mxu0 0.0
    %140 = vmatprep.subr.mxu0 0.0
    %141 = vmatpush1.msra.mxu0 0.0
    %142 = vmatprep.subr.mxu0 0.0
    %143 = vmatpush1.msra.mxu0 0.0
    %144 = vmatprep.subr.mxu0 0.0
    %145 = vmatpush1.msra.mxu0 0.0
    %146 = vmatprep.subr.mxu0 0.0
    %147 = vmatpush1.msra.mxu0 0.0
    %148 = vmatprep.subr.mxu0 0.0
    %149 = vmatpush1.msra.mxu0 0.0
    %150 = vmatprep.subr.mxu0 0.0
    %151 = vmatpush1.msra.mxu0 0.0
    %152 = vmatprep.subr.mxu0 0.0
    %153 = vmatpush1.msra.mxu0 0.0
    %154 = vmatprep.subr.mxu0 0.0
    %155 = vmatpush1.msra.mxu0 0.0
    %156 = vmatprep.subr.mxu0 0.0
    %157 = vmatpush1.msra.mxu0 0.0
    %158 = vmatprep.subr.mxu0 0.0
    %159 = vmatpush1.msra.mxu0 0.0
    %160 = vmatprep.mubr.f32.mxu0 0.0
    %161 = vmatmul.mubr.f32.gmra.mrb[0].mxu0 %v94
    %v162 = vpop.f32.mrb[0].mxu0
    %v163 = vadd.f32 0.0, %v162
    %v164 = vpop.f32.mrb[0].mxu0
    %165 = vdwg.mxu0
    %v166 = vld [vmem:[%s3] sm:$0xff]
    %v167 = vld [vmem:[%s3 + $0x8] sm:$0xff]
    %v168 = vld [vmem:[%s3 + $0x10] sm:$0xff]
    %v169 = vld [vmem:[%s3 + $0x18] sm:$0xff]
    %170 = vmatprep.subr.mxu0 0.0
    %171 = vmatpush1.msra.mxu0 %v166
    %172 = vmatprep.subr.mxu0 0.0
    %173 = vmatpush1.msra.mxu0 %v167
    %174 = vmatprep.subr.mxu0 0.0
    %175 = vmatpush1.msra.mxu0 %v168
    %176 = vmatprep.subr.mxu0 0.0
    %177 = vmatpush1.msra.mxu0 %v169
    %178 = vmatprep.subr.mxu0 0.0
    %179 = vmatpush1.msra.mxu0 0.0
    %180 = vmatprep.subr.mxu0 0.0
    %181 = vmatpush1.msra.mxu0 0.0
    %182 = vmatprep.subr.mxu0 0.0
    %183 = vmatpush1.msra.mxu0 0.0
    %184 = vmatprep.subr.mxu0 0.0
    %185 = vmatpush1.msra.mxu0 0.0
    %186 = vmatprep.subr.mxu0 0.0
    %187 = vmatpush1.msra.mxu0 0.0
    %188 = vmatprep.subr.mxu0 0.0
    %189 = vmatpush1.msra.mxu0 0.0
    %190 = vmatprep.subr.mxu0 0.0
    %191 = vmatpush1.msra.mxu0 0.0
    %192 = vmatprep.subr.mxu0 0.0
    %193 = vmatpush1.msra.mxu0 0.0
    %194 = vmatprep.subr.mxu0 0.0
    %195 = vmatpush1.msra.mxu0 0.0
    %196 = vmatprep.subr.mxu0 0.0
    %197 = vmatpush1.msra.mxu0 0.0
    %198 = vmatprep.subr.mxu0 0.0
    %199 = vmatpush1.msra.mxu0 0.0
    %200 = vmatprep.subr.mxu0 0.0
    %201 = vmatpush1.msra.mxu0 0.0
    %202 = vmatprep.subr.mxu0 0.0
    %203 = vmatpush1.msra.mxu0 0.0
    %204 = vmatprep.subr.mxu0 0.0
    %205 = vmatpush1.msra.mxu0 0.0
    %206 = vmatprep.subr.mxu0 0.0
    %207 = vmatpush1.msra.mxu0 0.0
    %208 = vmatprep.subr.mxu0 0.0
    %209 = vmatpush1.msra.mxu0 0.0
    %210 = vmatprep.subr.mxu0 0.0
    %211 = vmatpush1.msra.mxu0 0.0
    %212 = vmatprep.subr.mxu0 0.0
    %213 = vmatpush1.msra.mxu0 0.0
    %214 = vmatprep.subr.mxu0 0.0
    %215 = vmatpush1.msra.mxu0 0.0
    %216 = vmatprep.subr.mxu0 0.0
    %217 = vmatpush1.msra.mxu0 0.0
    %218 = vmatprep.subr.mxu0 0.0
    %219 = vmatpush1.msra.mxu0 0.0
    %220 = vmatprep.subr.mxu0 0.0
    %221 = vmatpush1.msra.mxu0 0.0
    %222 = vmatprep.subr.mxu0 0.0
    %223 = vmatpush1.msra.mxu0 0.0
    %224 = vmatprep.subr.mxu0 0.0
    %225 = vmatpush1.msra.mxu0 0.0
    %226 = vmatprep.subr.mxu0 0.0
    %227 = vmatpush1.msra.mxu0 0.0
    %228 = vmatprep.subr.mxu0 0.0
    %229 = vmatpush1.msra.mxu0 0.0
    %230 = vmatprep.subr.mxu0 0.0
    %231 = vmatpush1.msra.mxu0 0.0
    %232 = vmatprep.subr.mxu0 0.0
    %233 = vmatpush1.msra.mxu0 0.0
    %234 = vmatprep.mubr.f32.mxu0 0.0
    %235 = vmatmul.mubr.f32.gmra.mrb[0].mxu0 %v94
    %v236 = vpop.f32.mrb[0].mxu0
    %v237 = vadd.f32 0.0, %v236
    %v238 = vpop.f32.mrb[0].mxu0
    %239 = vdwg.mxu0
    %v240 = vmul.f32 %v163, %v163
    %242 = vset.pattern.permute.xlu0 0
    %243 = vperm.xlu0 %242, %v240
    %v244 = vpop.permute.xlu0 %243
    %v246 = vmul.f32 %v244, %v78
    %v247 = vmax.f32 %v246, 0.0
    %v248 = vmin.f32 %v247, 1.0
    %v249 = vmul.f32 %v237, %v237
    %v250 = vsub.f32 1.0, %v78
    %v251 = vmul.f32 %v249, %v250
    %v252 = vmax.f32 %v251, 0.0
    %v253 = vmin.f32 %v252, 1.0
    %v254 = vsub.f32 %v248, %v253
    %vm255 = vcmask 80896
    %v256 = vsel %vm255, %v77, -inf
    %257 = vmax.xlane.f32.xlu0 %v256
    %v258 = vpop.xlane.xlu0 %257
    %v259 = vsub.f32 %v77, %v258
    %v260 = vmul.f32 %v259, 1.442695
    %v261 = vpow.pop %v260
    %v262 = vsel %vm255, %v261, 0.0
    %263 = vadd.xlane.f32.xlu0 %v262
    %v264 = vpop.xlane.xlu0 %263
    %v265 = vrcp.pop %v264
    %v266 = vmul.f32 %v261, %v265
    %v268 = vsel %vm255, %v266, 0
    %vm270 = vcmask 1041408
    %v272 = vsel %vm270, %v76, 0
    %274 = vmatprep.subr.mxu0 0.0
    %275 = vmatpush1.msra.mxu0 %v75
    %276 = vmatprep.subr.mxu0 0.0
    %277 = vmatpush1.msra.mxu0 %v272
    %278 = vmatprep.subr.mxu0 0.0
    %279 = vmatpush1.msra.mxu0 0.0
    %280 = vmatprep.subr.mxu0 0.0
    %281 = vmatpush1.msra.mxu0 0.0
    %282 = vmatprep.subr.mxu0 0.0
    %283 = vmatpush1.msra.mxu0 0.0
    %284 = vmatprep.subr.mxu0 0.0
    %285 = vmatpush1.msra.mxu0 0.0
    %286 = vmatprep.subr.mxu0 0.0
    %287 = vmatpush1.msra.mxu0 0.0
    %288 = vmatprep.subr.mxu0 0.0
    %289 = vmatpush1.msra.mxu0 0.0
    %290 = vmatprep.subr.mxu0 0.0
    %291 = vmatpush1.msra.mxu0 0.0
    %292 = vmatprep.subr.mxu0 0.0
    %293 = vmatpush1.msra.mxu0 0.0
    %294 = vmatprep.subr.mxu0 0.0
    %295 = vmatpush1.msra.mxu0 0.0
    %296 = vmatprep.subr.mxu0 0.0
    %297 = vmatpush1.msra.mxu0 0.0
    %298 = vmatprep.subr.mxu0 0.0
    %299 = vmatpush1.msra.mxu0 0.0
    %300 = vmatprep.subr.mxu0 0.0
    %301 = vmatpush1.msra.mxu0 0.0
    %302 = vmatprep.subr.mxu0 0.0
    %303 = vmatpush1.msra.mxu0 0.0
    %304 = vmatprep.subr.mxu0 0.0
    %305 = vmatpush1.msra.mxu0 0.0
    %306 = vmatprep.subr.mxu0 0.0
    %307 = vmatpush1.msra.mxu0 0.0
    %308 = vmatprep.subr.mxu0 0.0
    %309 = vmatpush1.msra.mxu0 0.0
    %310 = vmatprep.subr.mxu0 0.0
    %311 = vmatpush1.msra.mxu0 0.0
    %312 = vmatprep.subr.mxu0 0.0
    %313 = vmatpush1.msra.mxu0 0.0
    %314 = vmatprep.subr.mxu0 0.0
    %315 = vmatpush1.msra.mxu0 0.0
    %316 = vmatprep.subr.mxu0 0.0
    %317 = vmatpush1.msra.mxu0 0.0
    %318 = vmatprep.subr.mxu0 0.0
    %319 = vmatpush1.msra.mxu0 0.0
    %320 = vmatprep.subr.mxu0 0.0
    %321 = vmatpush1.msra.mxu0 0.0
    %322 = vmatprep.subr.mxu0 0.0
    %323 = vmatpush1.msra.mxu0 0.0
    %324 = vmatprep.subr.mxu0 0.0
    %325 = vmatpush1.msra.mxu0 0.0
    %326 = vmatprep.subr.mxu0 0.0
    %327 = vmatpush1.msra.mxu0 0.0
    %328 = vmatprep.subr.mxu0 0.0
    %329 = vmatpush1.msra.mxu0 0.0
    %330 = vmatprep.subr.mxu0 0.0
    %331 = vmatpush1.msra.mxu0 0.0
    %332 = vmatprep.subr.mxu0 0.0
    %333 = vmatpush1.msra.mxu0 0.0
    %334 = vmatprep.subr.mxu0 0.0
    %335 = vmatpush1.msra.mxu0 0.0
    %336 = vmatprep.subr.mxu0 0.0
    %337 = vmatpush1.msra.mxu0 0.0
    %338 = vmatprep.mubr.f32.mxu0 0.0
    %339 = vmatmul.mubr.f32.gmra.mrb[0].mxu0 %v268
    %v340 = vpop.f32.mrb[0].mxu0
    %v341 = vadd.f32 %v254, %v340
    %v342 = vpop.f32.mrb[0].mxu0
    %343 = vdwg.mxu0
    %v344 = vmax.f32 %v341, 0.0001
    %v345 = vsel %vm255, %v344, 0.0
    %346 = vadd.xlane.f32.xlu0 %v345
    %v347 = vpop.xlane.xlu0 %346
    %v348 = vmax.f32 %v347, 0.0001
    %v349 = vrcp.pop %v348
    %v350 = vmul.f32 %v344, %v349
    %v351 = vmax.f32 %v350, 0.0001
    %v352 = vmin.f32 %v351, 1.0
    %vm353 = vcmp.eq.f32.partialorder %v77, %v258
    %v354 = vsel %vm353, %v81, 10
    %v355 = vsel %vm255, %v354, 2147483647
    %v356 = vand.u32 %v355, 65535
    %v357 = vshra.s32 %v355, 16
    %v358 = vcvt.s32.f32 %v356
    %v359 = vcvt.s32.f32 %v357
    %360 = vmin.xlane.f32.xlu0 %v359
    %v361 = vpop.xlane.xlu0 %360
    %vm362 = vcmp.eq.f32.partialorder %v359, %v361
    %v363 = vsel %vm362, %v358, inf
    %364 = vmin.xlane.f32.xlu0 %v363
    %v365 = vpop.xlane.xlu0 %364
    %v366 = vcvt.f32.s32 %v365
    %v367 = vcvt.f32.s32 %v361
    %v368 = vshll.u32 %v367, 16
    %v369 = vadd.s32 %v368, %v366
    %vm370 = vcmp.eq.s32.totalorder %v81, %v369
    %v371 = vsel %vm370, 1, 0
    %v372 = vcvt.s32.f32 %v371
    %v374 = vsel %vm255, %v372, 0
    %376 = vmatprep.subr.mxu0 0.0
    %377 = vmatpush1.msra.mxu0 %v75
    %378 = vmatprep.subr.mxu0 0.0
    %379 = vmatpush1.msra.mxu0 %v272
    %380 = vmatprep.subr.mxu0 0.0
    %381 = vmatpush1.msra.mxu0 0.0
    %382 = vmatprep.subr.mxu0 0.0
    %383 = vmatpush1.msra.mxu0 0.0
    %384 = vmatprep.subr.mxu0 0.0
    %385 = vmatpush1.msra.mxu0 0.0
    %386 = vmatprep.subr.mxu0 0.0
    %387 = vmatpush1.msra.mxu0 0.0
    %388 = vmatprep.subr.mxu0 0.0
    %389 = vmatpush1.msra.mxu0 0.0
    %390 = vmatprep.subr.mxu0 0.0
    %391 = vmatpush1.msra.mxu0 0.0
    %392 = vmatprep.subr.mxu0 0.0
    %393 = vmatpush1.msra.mxu0 0.0
    %394 = vmatprep.subr.mxu0 0.0
    %395 = vmatpush1.msra.mxu0 0.0
    %396 = vmatprep.subr.mxu0 0.0
    %397 = vmatpush1.msra.mxu0 0.0
    %398 = vmatprep.subr.mxu0 0.0
    %399 = vmatpush1.msra.mxu0 0.0
    %400 = vmatprep.subr.mxu0 0.0
    %401 = vmatpush1.msra.mxu0 0.0
    %402 = vmatprep.subr.mxu0 0.0
    %403 = vmatpush1.msra.mxu0 0.0
    %404 = vmatprep.subr.mxu0 0.0
    %405 = vmatpush1.msra.mxu0 0.0
    %406 = vmatprep.subr.mxu0 0.0
    %407 = vmatpush1.msra.mxu0 0.0
    %408 = vmatprep.subr.mxu0 0.0
    %409 = vmatpush1.msra.mxu0 0.0
    %410 = vmatprep.subr.mxu0 0.0
    %411 = vmatpush1.msra.mxu0 0.0
    %412 = vmatprep.subr.mxu0 0.0
    %413 = vmatpush1.msra.mxu0 0.0
    %414 = vmatprep.subr.mxu0 0.0
    %415 = vmatpush1.msra.mxu0 0.0
    %416 = vmatprep.subr.mxu0 0.0
    %417 = vmatpush1.msra.mxu0 0.0
    %418 = vmatprep.subr.mxu0 0.0
    %419 = vmatpush1.msra.mxu0 0.0
    %420 = vmatprep.subr.mxu0 0.0
    %421 = vmatpush1.msra.mxu0 0.0
    %422 = vmatprep.subr.mxu0 0.0
    %423 = vmatpush1.msra.mxu0 0.0
    %424 = vmatprep.subr.mxu0 0.0
    %425 = vmatpush1.msra.mxu0 0.0
    %426 = vmatprep.subr.mxu0 0.0
    %427 = vmatpush1.msra.mxu0 0.0
    %428 = vmatprep.subr.mxu0 0.0
    %429 = vmatpush1.msra.mxu0 0.0
    %430 = vmatprep.subr.mxu0 0.0
    %431 = vmatpush1.msra.mxu0 0.0
    %432 = vmatprep.subr.mxu0 0.0
    %433 = vmatpush1.msra.mxu0 0.0
    %434 = vmatprep.subr.mxu0 0.0
    %435 = vmatpush1.msra.mxu0 0.0
    %436 = vmatprep.subr.mxu0 0.0
    %437 = vmatpush1.msra.mxu0 0.0
    %438 = vmatprep.subr.mxu0 0.0
    %439 = vmatpush1.msra.mxu0 0.0
    %440 = vmatprep.mubr.f32.mxu0 0.0
    %441 = vmatmul.mubr.f32.gmra.mrb[0].mxu0 %v374
    %v442 = vpop.f32.mrb[0].mxu0
    %v443 = vadd.f32 %v254, %v442
    %v444 = vpop.f32.mrb[0].mxu0
    %445 = vdwg.mxu0
    %v446 = vsub.f32 %v443, %v78
    %s447 = smul.u32 0, 8
    %v448 = vlaneseq
    %v449 = vshrl.u32 %v448, 7
    %v450 = vstv %s447
    %v451 = vadd.s32 %v450, %v449
    %vm452 = vcmp.lt.s32.totalorder %v451, 8
    %v453 = vlog2.pop %v352
    %v454 = vmul.f32 %v453, 0.6931472
    %v455 = vmul.f32 %v78, %v454
    %v456 = vsel %vm255, %v455, 0.0
    %457 = vadd.xlane.f32.xlu0 %v456
    %v458 = vpop.xlane.xlu0 %457
    %v459 = vsub.f32 0.0, %v458
    %v460 = vmul.f32 %v446, %v446
    %v461 = vsel %vm255, %v460, 0.0
    %462 = vadd.xlane.f32.xlu0 %v461
    %v463 = vpop.xlane.xlu0 %462
    %v464 = vld [vmem:[#allocation3] sm:$0x1]
    %v465 = vsel %vm452, %v459, 0.0
    %v466 = vrot.slane %v465, 4
    %v467 = vadd.f32 %v465, %v466
    %v468 = vrot.slane %v467, 2
    %v469 = vadd.f32 %v467, %v468
    %v470 = vrot.slane %v469, 1
    %v471 = vadd.f32 %v469, %v470
    %v472 = vadd.f32 %v464, %v471
    %vm473 = vcmask 0
    %474 = vst.msk [vmem:[#allocation3] sm:$0x1] %vm473, %v472
    %v475 = vld [vmem:[#allocation4] sm:$0x1]
    %v476 = vsel %vm452, %v463, 0.0
    %v477 = vrot.slane %v476, 4
    %v478 = vadd.f32 %v476, %v477
    %v479 = vrot.slane %v478, 2
    %v480 = vadd.f32 %v478, %v479
    %v481 = vrot.slane %v480, 1
    %v482 = vadd.f32 %v480, %v481
    %v483 = vadd.f32 %v475, %v482
    %484 = vst.msk [vmem:[#allocation4] sm:$0x1] %vm473, %v483
    %v485 = vld [vmem:[#allocation5] sm:$0x1]
    %v486 = vsel %vm452, 1, 0
    %vm487 = vcmp.eq.s32.totalorder %v486, 1
    %v488 = vsel %vm487, %v352, 0.0
    %v489 = vsel %vm255, %v488, 0.0
    %v490 = vrot.slane %v489, 4
    %v491 = vadd.f32 %v489, %v490
    %v492 = vrot.slane %v491, 2
    %v493 = vadd.f32 %v491, %v492
    %v494 = vrot.slane %v493, 1
    %v495 = vadd.f32 %v493, %v494
    %v496 = vadd.f32 %v485, %v495
    %vm497 = vcmask 73728
    %498 = vst.msk [vmem:[#allocation5] sm:$0x1] %vm497, %v496
    // Predicated region
    $region30: #{sop_trans_loss_forward.1} parent=1 // pred_check
      %p499 = pneg %p24
    $region31: #{sop_trans_loss_forward.1} parent=1 // pred_check_branch
      %501 = sbr.rel (%p499) target = $region33
    $region32: #{sop_trans_loss_forward.1} parent=1 // pred_region
      %v502 = vld [vmem:[#allocation5] sm:$0x1]
      %v503 = vmul.f32 %v502, 0.125
      %v504 = vmax.f32 %v503, 0.0001
      %v505 = vmin.f32 %v504, 1.0
      %v506 = vlog2.pop %v505
      %v507 = vmul.f32 %v506, 0.6931472
      %v508 = vsel %vm497, %v507, 0.0
      %509 = vadd.xlane.f32.xlu0 %v508
      %v510 = vpop.xlane.xlu0 %509
      %v511 = vrot.slane %v510, 4
      %v512 = vadd.f32 %v510, %v511
      %v513 = vrot.slane %v512, 2
      %v514 = vadd.f32 %v512, %v513
      %v515 = vrot.slane %v514, 1
      %v516 = vadd.f32 %v514, %v515
      %s517 = vtos %v516
      %s518 = ssub.f32 0.0, %s517
      %s519 = smul.f32 %s518, 0.1
      %v520 = vld [vmem:[#allocation3] sm:$0x1]
      %v521 = vld [vmem:[#allocation4] sm:$0x1]
      %v522 = vadd.f32 %v520, %v521
      %v523 = vmul.f32 %v522, 0.125
      %s524 = smul.f32 %s519, 0.1
      %v525 = vstv %s524
      %v526 = vadd.f32 %v523, %v525
      %527 = vst.msk [vmem:[#allocation6] sm:$0x1] %vm473, %v526
    $region33: #{sop_trans_loss_forward.1} parent=1 // pred_fallthru
      _
    // Predicated region
    $region34: #{sop_trans_loss_forward.1} parent=1 // pred_check
      _
    $region35: #{sop_trans_loss_forward.1} parent=1 // pred_check_branch
      %529 = sbr.rel (0) target = $region37
    $region36: #{sop_trans_loss_forward.1} parent=1 // pred_region
      %s531 = ssub.s32 16, 16
      %532 = vsyncadd [#allocation7], %s531
      %s534 = sshll.u32 [#allocation6], 4
      %s535 = int_to_ptr.vmem [resolvable:$true] %s534
      %537 = dma.vmem_to_hbm [thread:$0]  %s535, 16, %s6, [#allocation7]
    $region37: #{sop_trans_loss_forward.1} parent=1 // pred_fallthru
      _
    // Predicated region
    $region38: #{sop_trans_loss_forward.1} parent=1 // pred_check
      _
    $region39: #{sop_trans_loss_forward.1} parent=1 // pred_check_branch
      %539 = sbr.rel (0) target = $region41
    $region40: #{sop_trans_loss_forward.1} parent=1 // pred_region
      %540 = dma.done [#allocation7], 16
    $region41: #{sop_trans_loss_forward.1} parent=1 // pred_fallthru
      _
    %541 = vsyncpa [#allocation7], 1

</llo_original>
